<compile_context>
chip_gen: v5e
topology: v5e:2x2
jax: 0.10.0
libtpu: 0.0.40
codegen_flags: <defaults>
</compile_context>

<pallas_src>
import functools

import jax
import jax.numpy as jnp
from jax import lax
from jax.experimental import pallas as pl
from jax.experimental.pallas import tpu as pltpu

HIGHEST = jax.lax.Precision.HIGHEST


def _lane_shift(a, off):
    """b[:, s] = a[:, s + off] where s + off is inside [0, S); 0 elsewhere.

    Out-of-range lanes are zero-filled; combined with the column masks this
    implements SAME zero padding exactly (see tap construction below).
    """
    if off == 0:
        return a
    c, s = a.shape
    pad = jnp.zeros((c, abs(off)), a.dtype)
    if off > 0:
        return jnp.concatenate([a[:, off:], pad], axis=1)
    return jnp.concatenate([pad, a[:, : s + off]], axis=1)


def cab_kernel(x_ref, w1_ref, w2_ref, wd1_ref, wd2_ref, o_ref, *, H, W):
    """`Bblk` images per grid step.

    x_ref  : (Bblk, C, H*W) f32   input slab (also the residual)
    w1_ref : (C, 9*C)       bf16  conv1 weights, column = (ky*3+kx)*C + cin
    w2_ref : (C, 9*C)       bf16  conv2 weights
    wd1_ref: (Cr, C)        f32   CA squeeze 1x1 conv
    wd2_ref: (C, Cr)        f32   CA excite  1x1 conv
    o_ref  : (Bblk, C, H*W) f32
    """
    Bblk, C, S = x_ref.shape

    # Column coordinate of every lane (hoisted: shared by both convs and all
    # images in the block).  Row masks are unnecessary: with the zero-fill
    # lane shift, any tap whose neighbour row is outside the image either
    # lands at a lane outside [0, S) (already zero) or at a lane the column
    # mask zeroes anyway.  Exact for SAME zero padding.
    xcol = lax.broadcasted_iota(jnp.int32, (C, S), 1) % W
    m_left = xcol >= 1            # dx = -1 taps
    m_right = xcol < (W - 1)      # dx = +1 taps

    taps = []
    for dy in (-1, 0, 1):
        for dx in (-1, 0, 1):
            m = m_left if dx == -1 else (m_right if dx == 1 else None)
            taps.append((dy * W + dx, m))

    def conv3x3(a_bf16, w):
        # im2col patch matrix (9*C, S) built directly in bf16 -> one K=9*C
        # MXU matmul with f32 accumulation.
        pieces = []
        for off, m in taps:
            t = _lane_shift(a_bf16, off)
            if m is not None:
                t = jnp.where(m, t, 0.0)
            pieces.append(t)
        patches = jnp.concatenate(pieces, axis=0)
        return jnp.dot(w, patches, preferred_element_type=jnp.float32)  # (C,S)

    # Hoist weight loads out of the per-image loop.
    w1 = w1_ref[...]
    w2 = w2_ref[...]
    wd1 = wd1_ref[...]
    wd2 = wd2_ref[...]

    for bi in range(Bblk):            # static unroll over images in the block
        x = x_ref[bi]                                         # (C, S) f32

        # body: conv -> ReLU -> conv (elementwise math stays f32)
        r1 = jnp.maximum(conv3x3(x.astype(jnp.bfloat16), w1), 0.0)
        r2 = conv3x3(r1.astype(jnp.bfloat16), w2)             # (C, S) f32

        # Pool-first channel attention: GAP over lanes, then squeeze/excite on
        # tiny (C,1)/(Cr,1) vectors; the sigmoid gate broadcasts across lanes
        # in the final multiply.
        pooled = jnp.mean(r2, axis=1, keepdims=True)          # (C, 1)
        y1 = jnp.maximum(
            jnp.dot(wd1, pooled, preferred_element_type=jnp.float32), 0.0)
        gate = jax.nn.sigmoid(
            jnp.dot(wd2, y1, preferred_element_type=jnp.float32))  # (C, 1)

        # scale + residual; fully lane-dense store.
        o_ref[bi] = (r2 * gate + x).astype(o_ref.dtype)


def cab_pallas(x_nchw, w1, w2, wd1, wd2, *, images_per_step=1):
    """x_nchw: (N, C, H, W) f32.  Weights in PyTorch Conv2d layouts:
    w1, w2: (C, C, 3, 3);  wd1: (Cr, C, 1, 1);  wd2: (C, Cr, 1, 1)."""
    N, C, H, W = x_nchw.shape
    S = H * W
    Cr = wd1.shape[0]
    bblk = images_per_step
    assert N % bblk == 0, "images_per_step must divide the batch"

    # NCHW -> (N, C, H*W): a free reshape (no transpose, no HBM padding).
    x3 = x_nchw.reshape(N, C, S)

    # (Cout, Cin, 3, 3) -> (Cout, 9*Cin), column = (ky*3+kx)*Cin + cin,
    # matching the in-kernel patch layout.  Cast once to bf16 (MXU-native
    # operands, f32 accumulation in-kernel).
    wf1 = jnp.transpose(w1, (0, 2, 3, 1)).reshape(C, 9 * C).astype(jnp.bfloat16)
    wf2 = jnp.transpose(w2, (0, 2, 3, 1)).reshape(C, 9 * C).astype(jnp.bfloat16)
    wd1_2d = wd1.reshape(Cr, C)
    wd2_2d = wd2.reshape(C, Cr)

    # TODO(synk): for production CAB sizes (C>=64, H,W>=256) this
    # whole-image-per-step design does not fit VMEM (esp. v7x's 64 MiB): add a
    # row-band grid axis with a 2-row input halo (three shifted x blocks or a
    # pl.ANY input + manual DMA), a two-pass channel attention (accumulate
    # per-band channel sums with that axis "arbitrary", apply the gate +
    # residual in a second pass), per-generation band sizing and an explicit
    # vmem_limit_bytes; mark the band/batch axis CORE_PARALLEL on v7x.
    out3 = pl.pallas_call(
        functools.partial(cab_kernel, H=H, W=W),
        out_shape=jax.ShapeDtypeStruct((N, C, S), jnp.float32),
        grid=(N // bblk,),
        in_specs=[
            pl.BlockSpec((bblk, C, S), lambda b: (b, 0, 0)),
            pl.BlockSpec((C, 9 * C), lambda b: (0, 0)),
            pl.BlockSpec((C, 9 * C), lambda b: (0, 0)),
            pl.BlockSpec((Cr, C), lambda b: (0, 0)),
            pl.BlockSpec((C, Cr), lambda b: (0, 0)),
        ],
        out_specs=pl.BlockSpec((bblk, C, S), lambda b: (b, 0, 0)),
        compiler_params=pltpu.CompilerParams(
            # batch images are independent; on v7x switch to
            # pltpu.CORE_PARALLEL to shard this axis across the 2 TensorCores.
            dimension_semantics=("parallel",)),
    )(x3, wf1, wf2, wd1_2d, wd2_2d)

    return out3.reshape(N, C, H, W)


def cab_reference(x, w1, w2, wd1, wd2):
    """Pure-JAX f32 reference mirroring the PyTorch CAB forward (NCHW)."""
    dn = ("NCHW", "OIHW", "NCHW")
    r = lax.conv_general_dilated(x, w1, (1, 1), "SAME",
                                 dimension_numbers=dn, precision=HIGHEST)
    r = jnp.maximum(r, 0.0)
    r = lax.conv_general_dilated(r, w2, (1, 1), "SAME",
                                 dimension_numbers=dn, precision=HIGHEST)
    y = jnp.mean(r, axis=(2, 3))                                     # (N, C)
    y1 = jnp.maximum(jnp.einsum("rc,nc->nr", wd1.reshape(wd1.shape[0], -1), y,
                                precision=HIGHEST), 0.0)             # (N, Cr)
    y2 = jax.nn.sigmoid(jnp.einsum("cr,nr->nc", wd2.reshape(wd2.shape[0], -1),
                                   y1, precision=HIGHEST))           # (N, C)
    return r * y2[:, :, None, None] + x


if __name__ == "__main__":
    # CAB(n_feat=16, kernel_size=3, reduction=4, bias=False, act=nn.ReLU())
    N, C, H, W = 2, 16, 16, 16
    reduction = 4
    Cr = C // reduction

    key = jax.random.PRNGKey(0)
    kx, k1, k2, k3, k4 = jax.random.split(key, 5)

    x = jax.random.normal(kx, (N, C, H, W), dtype=jnp.float32)       # NCHW
    # PyTorch Conv2d weight layouts (bias=False everywhere).
    w1 = 0.1 * jax.random.normal(k1, (C, C, 3, 3), dtype=jnp.float32)
    w2 = 0.1 * jax.random.normal(k2, (C, C, 3, 3), dtype=jnp.float32)
    wd1 = 0.1 * jax.random.normal(k3, (Cr, C, 1, 1), dtype=jnp.float32)
    wd2 = 0.1 * jax.random.normal(k4, (C, Cr, 1, 1), dtype=jnp.float32)

    out = jax.block_until_ready(cab_pallas(x, w1, w2, wd1, wd2))
    ref = jax.block_until_ready(cab_reference(x, w1, w2, wd1, wd2))

    assert out.shape == (N, C, H, W)
    # bf16 MXU operands (f32 accumulation) vs the f32 reference -> loosened
    # tolerance relative to a pure-f32 comparison.
    max_err = float(jnp.max(jnp.abs(out - ref)))
    assert jnp.allclose(out, ref, atol=5e-2, rtol=5e-2), max_err
    print("KERNEL_OK")
</pallas_src>

<mosaic_0001>
module attributes {stable_mosaic.version = 11 : i64} {
  func.func @cab_kernel(%arg0: i32, %arg1: memref<1x16x256xf32, #tpu.memory_space<vmem>>, %arg2: memref<16x144xbf16, #tpu.memory_space<vmem>>, %arg3: memref<16x144xbf16, #tpu.memory_space<vmem>>, %arg4: memref<4x16xf32, #tpu.memory_space<vmem>>, %arg5: memref<16x4xf32, #tpu.memory_space<vmem>>, %arg6: memref<1x16x256xf32, #tpu.memory_space<vmem>>) attributes {dimension_semantics = [#tpu.dimension_semantics<parallel>], iteration_bounds = array<i64: 2>, scalar_prefetch = 0 : i64, scratch_operands = 0 : i64, tpu.core_type = #tpu.core_type<tc>, window_params = [{transform_indices = @transform_0, window_bounds = array<i64: 1, 16, 256>}, {pipeline_mode = #tpu.pipeline_mode<synchronous>, transform_indices = @transform_1, window_bounds = array<i64: 16, 144>}, {pipeline_mode = #tpu.pipeline_mode<synchronous>, transform_indices = @transform_2, window_bounds = array<i64: 16, 144>}, {pipeline_mode = #tpu.pipeline_mode<synchronous>, transform_indices = @transform_3, window_bounds = array<i64: 4, 16>}, {pipeline_mode = #tpu.pipeline_mode<synchronous>, transform_indices = @transform_4, window_bounds = array<i64: 16, 4>}, {transform_indices = @transform_5, window_bounds = array<i64: 1, 16, 256>}]} {
    %0 = tpu.iota {dimensions = array<i32: 1>} : vector<16x256xi32>
    %c16_i32 = arith.constant 16 : i32
    %c0_i32 = arith.constant 0 : i32
    %1 = arith.cmpi eq, %c16_i32, %c0_i32 : i32
    %c1_i32 = arith.constant 1 : i32
    %2 = arith.select %1, %c1_i32, %c16_i32 : i32
    %3 = vector.broadcast %2 : i32 to vector<16x256xi32>
    %4 = arith.remsi %0, %3 : vector<16x256xi32>
    %c0_i32_0 = arith.constant 0 : i32
    %5 = vector.broadcast %c0_i32_0 : i32 to vector<16x256xi32>
    %6 = arith.cmpi ne, %4, %5 : vector<16x256xi32>
    %c0_i32_1 = arith.constant 0 : i32
    %7 = vector.broadcast %c0_i32_1 : i32 to vector<16x256xi32>
    %8 = arith.cmpi slt, %4, %7 : vector<16x256xi32>
    %c0_i32_2 = arith.constant 0 : i32
    %9 = arith.cmpi slt, %2, %c0_i32_2 : i32
    %10 = vector.broadcast %9 : i1 to vector<16x256xi1>
    %11 = vector.broadcast %10 : vector<16x256xi1> to vector<16x256xi1>
    %12 = arith.xori %8, %11 : vector<16x256xi1>
    %13 = arith.andi %12, %6 : vector<16x256xi1>
    %14 = vector.broadcast %2 : i32 to vector<16x256xi32>
    %15 = arith.addi %4, %14 : vector<16x256xi32>
    %16 = arith.select %13, %15, %4 : vector<16x256xi1>, vector<16x256xi32>
    %c1_i32_3 = arith.constant 1 : i32
    %17 = vector.broadcast %c1_i32_3 : i32 to vector<16x256xi32>
    %18 = arith.cmpi sge, %16, %17 : vector<16x256xi32>
    %c15_i32 = arith.constant 15 : i32
    %19 = vector.broadcast %c15_i32 : i32 to vector<16x256xi32>
    %20 = arith.cmpi slt, %16, %19 : vector<16x256xi32>
    %c0 = arith.constant 0 : index
    %c0_4 = arith.constant 0 : index
    %21 = vector.load %arg2[%c0, %c0_4] : memref<16x144xbf16, #tpu.memory_space<vmem>>, vector<16x144xbf16>
    %c0_5 = arith.constant 0 : index
    %c0_6 = arith.constant 0 : index
    %22 = vector.load %arg3[%c0_5, %c0_6] : memref<16x144xbf16, #tpu.memory_space<vmem>>, vector<16x144xbf16>
    %c0_7 = arith.constant 0 : index
    %c0_8 = arith.constant 0 : index
    %23 = vector.load %arg4[%c0_7, %c0_8] : memref<4x16xf32, #tpu.memory_space<vmem>>, vector<4x16xf32>
    %c0_9 = arith.constant 0 : index
    %c0_10 = arith.constant 0 : index
    %24 = vector.load %arg5[%c0_9, %c0_10] : memref<16x4xf32, #tpu.memory_space<vmem>>, vector<16x4xf32>
    %c0_11 = arith.constant 0 : index
    %c0_12 = arith.constant 0 : index
    %c0_13 = arith.constant 0 : index
    %25 = vector.load %arg1[%c0_11, %c0_12, %c0_13] : memref<1x16x256xf32, #tpu.memory_space<vmem>>, vector<1x16x256xf32>
    %26 = vector.shape_cast %25 : vector<1x16x256xf32> to vector<16x256xf32>
    %27 = arith.truncf %26 : vector<16x256xf32> to vector<16x256xbf16>
    %cst = arith.constant 0.000000e+00 : bf16
    %28 = vector.broadcast %cst : bf16 to vector<16x17xbf16>
    %29 = vector.extract_strided_slice %27 {offsets = [0, 0], sizes = [16, 239], strides = [1, 1]} : vector<16x256xbf16> to vector<16x239xbf16>
    %30 = tpu.concatenate %28, %29 in 1 : vector<16x17xbf16>, vector<16x239xbf16> -> vector<16x256xbf16>
    %cst_14 = arith.constant 0.000000e+00 : f32
    %31 = arith.truncf %cst_14 : f32 to bf16
    %32 = vector.broadcast %31 : bf16 to vector<16x256xbf16>
    %33 = arith.select %18, %30, %32 : vector<16x256xi1>, vector<16x256xbf16>
    %cst_15 = arith.constant 0.000000e+00 : bf16
    %34 = vector.broadcast %cst_15 : bf16 to vector<16x16xbf16>
    %35 = vector.extract_strided_slice %27 {offsets = [0, 0], sizes = [16, 240], strides = [1, 1]} : vector<16x256xbf16> to vector<16x240xbf16>
    %36 = tpu.concatenate %34, %35 in 1 : vector<16x16xbf16>, vector<16x240xbf16> -> vector<16x256xbf16>
    %cst_16 = arith.constant 0.000000e+00 : bf16
    %37 = vector.broadcast %cst_16 : bf16 to vector<16x15xbf16>
    %38 = vector.extract_strided_slice %27 {offsets = [0, 0], sizes = [16, 241], strides = [1, 1]} : vector<16x256xbf16> to vector<16x241xbf16>
    %39 = tpu.concatenate %37, %38 in 1 : vector<16x15xbf16>, vector<16x241xbf16> -> vector<16x256xbf16>
    %cst_17 = arith.constant 0.000000e+00 : f32
    %40 = arith.truncf %cst_17 : f32 to bf16
    %41 = vector.broadcast %40 : bf16 to vector<16x256xbf16>
    %42 = arith.select %20, %39, %41 : vector<16x256xi1>, vector<16x256xbf16>
    %cst_18 = arith.constant 0.000000e+00 : bf16
    %43 = vector.broadcast %cst_18 : bf16 to vector<16x1xbf16>
    %44 = vector.extract_strided_slice %27 {offsets = [0, 0], sizes = [16, 255], strides = [1, 1]} : vector<16x256xbf16> to vector<16x255xbf16>
    %45 = tpu.concatenate %43, %44 in 1 : vector<16x1xbf16>, vector<16x255xbf16> -> vector<16x256xbf16>
    %cst_19 = arith.constant 0.000000e+00 : f32
    %46 = arith.truncf %cst_19 : f32 to bf16
    %47 = vector.broadcast %46 : bf16 to vector<16x256xbf16>
    %48 = arith.select %18, %45, %47 : vector<16x256xi1>, vector<16x256xbf16>
    %cst_20 = arith.constant 0.000000e+00 : bf16
    %49 = vector.broadcast %cst_20 : bf16 to vector<16x1xbf16>
    %50 = vector.extract_strided_slice %27 {offsets = [0, 1], sizes = [16, 255], strides = [1, 1]} : vector<16x256xbf16> to vector<16x255xbf16>
    %51 = tpu.concatenate %50, %49 in 1 : vector<16x255xbf16>, vector<16x1xbf16> -> vector<16x256xbf16>
    %cst_21 = arith.constant 0.000000e+00 : f32
    %52 = arith.truncf %cst_21 : f32 to bf16
    %53 = vector.broadcast %52 : bf16 to vector<16x256xbf16>
    %54 = arith.select %20, %51, %53 : vector<16x256xi1>, vector<16x256xbf16>
    %cst_22 = arith.constant 0.000000e+00 : bf16
    %55 = vector.broadcast %cst_22 : bf16 to vector<16x15xbf16>
    %56 = vector.extract_strided_slice %27 {offsets = [0, 15], sizes = [16, 241], strides = [1, 1]} : vector<16x256xbf16> to vector<16x241xbf16>
    %57 = tpu.concatenate %56, %55 in 1 : vector<16x241xbf16>, vector<16x15xbf16> -> vector<16x256xbf16>
    %cst_23 = arith.constant 0.000000e+00 : f32
    %58 = arith.truncf %cst_23 : f32 to bf16
    %59 = vector.broadcast %58 : bf16 to vector<16x256xbf16>
    %60 = arith.select %18, %57, %59 : vector<16x256xi1>, vector<16x256xbf16>
    %cst_24 = arith.constant 0.000000e+00 : bf16
    %61 = vector.broadcast %cst_24 : bf16 to vector<16x16xbf16>
    %62 = vector.extract_strided_slice %27 {offsets = [0, 16], sizes = [16, 240], strides = [1, 1]} : vector<16x256xbf16> to vector<16x240xbf16>
    %63 = tpu.concatenate %62, %61 in 1 : vector<16x240xbf16>, vector<16x16xbf16> -> vector<16x256xbf16>
    %cst_25 = arith.constant 0.000000e+00 : bf16
    %64 = vector.broadcast %cst_25 : bf16 to vector<16x17xbf16>
    %65 = vector.extract_strided_slice %27 {offsets = [0, 17], sizes = [16, 239], strides = [1, 1]} : vector<16x256xbf16> to vector<16x239xbf16>
    %66 = tpu.concatenate %65, %64 in 1 : vector<16x239xbf16>, vector<16x17xbf16> -> vector<16x256xbf16>
    %cst_26 = arith.constant 0.000000e+00 : f32
    %67 = arith.truncf %cst_26 : f32 to bf16
    %68 = vector.broadcast %67 : bf16 to vector<16x256xbf16>
    %69 = arith.select %20, %66, %68 : vector<16x256xi1>, vector<16x256xbf16>
    %70 = tpu.concatenate %33, %36, %42, %48, %27, %54, %60, %63, %69 in 0 : vector<16x256xbf16>, vector<16x256xbf16>, vector<16x256xbf16>, vector<16x256xbf16>, vector<16x256xbf16>, vector<16x256xbf16>, vector<16x256xbf16>, vector<16x256xbf16>, vector<16x256xbf16> -> vector<144x256xbf16>
    %cst_27 = arith.constant dense<0.000000e+00> : vector<16x256xf32>
    %71 = tpu.matmul %21, %70, %cst_27 {dimension_numbers = #tpu.dot_dimension_numbers<[1], [0], [0], [1], [0, 0, 1, 1], [], []>} : vector<16x144xbf16>, vector<144x256xbf16>, vector<16x256xf32> -> vector<16x256xf32>
    %cst_28 = arith.constant 0.000000e+00 : f32
    %72 = vector.broadcast %cst_28 : f32 to vector<16x256xf32>
    %73 = arith.maximumf %71, %72 : vector<16x256xf32>
    %74 = arith.truncf %73 : vector<16x256xf32> to vector<16x256xbf16>
    %cst_29 = arith.constant 0.000000e+00 : bf16
    %75 = vector.broadcast %cst_29 : bf16 to vector<16x17xbf16>
    %76 = vector.extract_strided_slice %74 {offsets = [0, 0], sizes = [16, 239], strides = [1, 1]} : vector<16x256xbf16> to vector<16x239xbf16>
    %77 = tpu.concatenate %75, %76 in 1 : vector<16x17xbf16>, vector<16x239xbf16> -> vector<16x256xbf16>
    %cst_30 = arith.constant 0.000000e+00 : f32
    %78 = arith.truncf %cst_30 : f32 to bf16
    %79 = vector.broadcast %78 : bf16 to vector<16x256xbf16>
    %80 = arith.select %18, %77, %79 : vector<16x256xi1>, vector<16x256xbf16>
    %cst_31 = arith.constant 0.000000e+00 : bf16
    %81 = vector.broadcast %cst_31 : bf16 to vector<16x16xbf16>
    %82 = vector.extract_strided_slice %74 {offsets = [0, 0], sizes = [16, 240], strides = [1, 1]} : vector<16x256xbf16> to vector<16x240xbf16>
    %83 = tpu.concatenate %81, %82 in 1 : vector<16x16xbf16>, vector<16x240xbf16> -> vector<16x256xbf16>
    %cst_32 = arith.constant 0.000000e+00 : bf16
    %84 = vector.broadcast %cst_32 : bf16 to vector<16x15xbf16>
    %85 = vector.extract_strided_slice %74 {offsets = [0, 0], sizes = [16, 241], strides = [1, 1]} : vector<16x256xbf16> to vector<16x241xbf16>
    %86 = tpu.concatenate %84, %85 in 1 : vector<16x15xbf16>, vector<16x241xbf16> -> vector<16x256xbf16>
    %cst_33 = arith.constant 0.000000e+00 : f32
    %87 = arith.truncf %cst_33 : f32 to bf16
    %88 = vector.broadcast %87 : bf16 to vector<16x256xbf16>
    %89 = arith.select %20, %86, %88 : vector<16x256xi1>, vector<16x256xbf16>
    %cst_34 = arith.constant 0.000000e+00 : bf16
    %90 = vector.broadcast %cst_34 : bf16 to vector<16x1xbf16>
    %91 = vector.extract_strided_slice %74 {offsets = [0, 0], sizes = [16, 255], strides = [1, 1]} : vector<16x256xbf16> to vector<16x255xbf16>
    %92 = tpu.concatenate %90, %91 in 1 : vector<16x1xbf16>, vector<16x255xbf16> -> vector<16x256xbf16>
    %cst_35 = arith.constant 0.000000e+00 : f32
    %93 = arith.truncf %cst_35 : f32 to bf16
    %94 = vector.broadcast %93 : bf16 to vector<16x256xbf16>
    %95 = arith.select %18, %92, %94 : vector<16x256xi1>, vector<16x256xbf16>
    %cst_36 = arith.constant 0.000000e+00 : bf16
    %96 = vector.broadcast %cst_36 : bf16 to vector<16x1xbf16>
    %97 = vector.extract_strided_slice %74 {offsets = [0, 1], sizes = [16, 255], strides = [1, 1]} : vector<16x256xbf16> to vector<16x255xbf16>
    %98 = tpu.concatenate %97, %96 in 1 : vector<16x255xbf16>, vector<16x1xbf16> -> vector<16x256xbf16>
    %cst_37 = arith.constant 0.000000e+00 : f32
    %99 = arith.truncf %cst_37 : f32 to bf16
    %100 = vector.broadcast %99 : bf16 to vector<16x256xbf16>
    %101 = arith.select %20, %98, %100 : vector<16x256xi1>, vector<16x256xbf16>
    %cst_38 = arith.constant 0.000000e+00 : bf16
    %102 = vector.broadcast %cst_38 : bf16 to vector<16x15xbf16>
    %103 = vector.extract_strided_slice %74 {offsets = [0, 15], sizes = [16, 241], strides = [1, 1]} : vector<16x256xbf16> to vector<16x241xbf16>
    %104 = tpu.concatenate %103, %102 in 1 : vector<16x241xbf16>, vector<16x15xbf16> -> vector<16x256xbf16>
    %cst_39 = arith.constant 0.000000e+00 : f32
    %105 = arith.truncf %cst_39 : f32 to bf16
    %106 = vector.broadcast %105 : bf16 to vector<16x256xbf16>
    %107 = arith.select %18, %104, %106 : vector<16x256xi1>, vector<16x256xbf16>
    %cst_40 = arith.constant 0.000000e+00 : bf16
    %108 = vector.broadcast %cst_40 : bf16 to vector<16x16xbf16>
    %109 = vector.extract_strided_slice %74 {offsets = [0, 16], sizes = [16, 240], strides = [1, 1]} : vector<16x256xbf16> to vector<16x240xbf16>
    %110 = tpu.concatenate %109, %108 in 1 : vector<16x240xbf16>, vector<16x16xbf16> -> vector<16x256xbf16>
    %cst_41 = arith.constant 0.000000e+00 : bf16
    %111 = vector.broadcast %cst_41 : bf16 to vector<16x17xbf16>
    %112 = vector.extract_strided_slice %74 {offsets = [0, 17], sizes = [16, 239], strides = [1, 1]} : vector<16x256xbf16> to vector<16x239xbf16>
    %113 = tpu.concatenate %112, %111 in 1 : vector<16x239xbf16>, vector<16x17xbf16> -> vector<16x256xbf16>
    %cst_42 = arith.constant 0.000000e+00 : f32
    %114 = arith.truncf %cst_42 : f32 to bf16
    %115 = vector.broadcast %114 : bf16 to vector<16x256xbf16>
    %116 = arith.select %20, %113, %115 : vector<16x256xi1>, vector<16x256xbf16>
    %117 = tpu.concatenate %80, %83, %89, %95, %74, %101, %107, %110, %116 in 0 : vector<16x256xbf16>, vector<16x256xbf16>, vector<16x256xbf16>, vector<16x256xbf16>, vector<16x256xbf16>, vector<16x256xbf16>, vector<16x256xbf16>, vector<16x256xbf16>, vector<16x256xbf16> -> vector<144x256xbf16>
    %cst_43 = arith.constant dense<0.000000e+00> : vector<16x256xf32>
    %118 = tpu.matmul %22, %117, %cst_43 {dimension_numbers = #tpu.dot_dimension_numbers<[1], [0], [0], [1], [0, 0, 1, 1], [], []>} : vector<16x144xbf16>, vector<144x256xbf16>, vector<16x256xf32> -> vector<16x256xf32>
    %cst_44 = arith.constant dense<0.000000e+00> : vector<16xf32>
    %119 = vector.multi_reduction <add>, %118, %cst_44 [1] : vector<16x256xf32> to vector<16xf32>
    %120 = vector.shape_cast %119 : vector<16xf32> to vector<16x1xf32>
    %cst_45 = arith.constant 2.560000e+02 : f32
    %121 = vector.broadcast %cst_45 : f32 to vector<16x1xf32>
    %122 = arith.divf %120, %121 : vector<16x1xf32>
    %cst_46 = arith.constant dense<0.000000e+00> : vector<4x1xf32>
    %123 = tpu.matmul %23, %122, %cst_46 {dimension_numbers = #tpu.dot_dimension_numbers<[1], [0], [0], [1], [0, 0, 1, 1], [], []>} : vector<4x16xf32>, vector<16x1xf32>, vector<4x1xf32> -> vector<4x1xf32>
    %cst_47 = arith.constant 0.000000e+00 : f32
    %124 = vector.broadcast %cst_47 : f32 to vector<4x1xf32>
    %125 = arith.maximumf %123, %124 : vector<4x1xf32>
    %cst_48 = arith.constant dense<0.000000e+00> : vector<16x1xf32>
    %126 = tpu.matmul %24, %125, %cst_48 {dimension_numbers = #tpu.dot_dimension_numbers<[1], [0], [0], [1], [0, 0, 1, 1], [], []>} : vector<16x4xf32>, vector<4x1xf32>, vector<16x1xf32> -> vector<16x1xf32>
    %127 = arith.negf %126 : vector<16x1xf32>
    %128 = math.exp %127 : vector<16x1xf32>
    %cst_49 = arith.constant 1.000000e+00 : f32
    %129 = vector.broadcast %cst_49 : f32 to vector<16x1xf32>
    %130 = arith.addf %129, %128 : vector<16x1xf32>
    %131 = arith.divf %129, %130 : vector<16x1xf32>
    %132 = vector.broadcast %131 : vector<16x1xf32> to vector<16x256xf32>
    %133 = arith.mulf %118, %132 : vector<16x256xf32>
    %134 = arith.addf %133, %26 : vector<16x256xf32>
    %c0_50 = arith.constant 0 : index
    %c0_51 = arith.constant 0 : index
    %c0_52 = arith.constant 0 : index
    %135 = vector.load %arg6[%c0_50, %c0_51, %c0_52] : memref<1x16x256xf32, #tpu.memory_space<vmem>>, vector<1x16x256xf32>
    %136 = vector.shape_cast %135 : vector<1x16x256xf32> to vector<16x256xf32>
    %137 = vector.shape_cast %134 : vector<16x256xf32> to vector<1x16x256xf32>
    tpu.vector_store %arg6[%c0_50, %c0_51, %c0_52], %137 {strides = array<i32>} : memref<1x16x256xf32, #tpu.memory_space<vmem>>, vector<1x16x256xf32>,
    return
  }
  func.func @transform_0(%arg0: i32) -> (i32, i32, i32) {
    %c0_i32 = arith.constant 0 : i32
    %c0_i32_0 = arith.constant 0 : i32
    %c0_i32_1 = arith.constant 0 : i32
    return %arg0, %c0_i32, %c0_i32_0 : i32, i32, i32
  }
  func.func @transform_1(%arg0: i32) -> (i32, i32) {
    %c0_i32 = arith.constant 0 : i32
    %c0_i32_0 = arith.constant 0 : i32
    %c0_i32_1 = arith.constant 0 : i32
    return %c0_i32, %c0_i32_0 : i32, i32
  }
  func.func @transform_2(%arg0: i32) -> (i32, i32) {
    %c0_i32 = arith.constant 0 : i32
    %c0_i32_0 = arith.constant 0 : i32
    %c0_i32_1 = arith.constant 0 : i32
    return %c0_i32, %c0_i32_0 : i32, i32
  }
  func.func @transform_3(%arg0: i32) -> (i32, i32) {
    %c0_i32 = arith.constant 0 : i32
    %c0_i32_0 = arith.constant 0 : i32
    %c0_i32_1 = arith.constant 0 : i32
    return %c0_i32, %c0_i32_0 : i32, i32
  }
  func.func @transform_4(%arg0: i32) -> (i32, i32) {
    %c0_i32 = arith.constant 0 : i32
    %c0_i32_0 = arith.constant 0 : i32
    %c0_i32_1 = arith.constant 0 : i32
    return %c0_i32, %c0_i32_0 : i32, i32
  }
  func.func @transform_5(%arg0: i32) -> (i32, i32, i32) {
    %c0_i32 = arith.constant 0 : i32
    %c0_i32_0 = arith.constant 0 : i32
    %c0_i32_1 = arith.constant 0 : i32
    return %arg0, %c0_i32, %c0_i32_0 : i32, i32, i32
  }
}

</mosaic_0001>

<llo_original>
// kernel: tpu_custom_call.1
$region0: #{tpu_custom_call.1}
  #allocation0 [shape = 'u32[]', space=smem, size = 0x4, offset = 0x4, fixed_abs, tag = 'smem constant byte address 0x4 - core index']
  #allocation1 [shape = 'u32[72,128]{1,0:T(1,128)}', space=vmem, size = 0x9000, scoped, tag = 'internal scratch']
  %s0 = inlined_call_operand.hbm [shape: f32[2,16,256], index: 0, kind: input, shape index: {}]
  %s1 = inlined_call_operand.vmem [shape: bf16[16,144], index: 1, kind: input, shape index: {}]
  %s2 = inlined_call_operand.hbm [shape: bf16[16,144], index: 2, kind: input, shape index: {}]
  %s3 = inlined_call_operand.vmem [shape: f32[4,16], index: 3, kind: input, shape index: {}]
  %s4 = inlined_call_operand.vmem [shape: f32[16,4], index: 4, kind: input, shape index: {}]
  %s5 = inlined_call_operand.hbm [shape: f32[2,16,256], index: 5, kind: output, shape index: {}]
  %s6 = sld [smem:[#allocation0]]
  $region61: #{tpu_custom_call.1} parent=0
    _
  %s8 = ssub.s32 1, %s6
  %s9 = scalar_select 0, %s8, %s6
  $region1: #{tpu_custom_call.1} parent=0
    #allocation2 [shape = 'u8[32768]{0}', space=vmem, size = 0x8000, scoped, tag = 'input window, operand 0']
    #allocation3 [shape = 's32[2]{0}', space=sflag, size = 0x8, scoped, tag = 'scoped memory for tpu_custom_call.1']
    #allocation4 [shape = 's32[2]{0}', space=sflag, size = 0x8, scoped, tag = 'scoped memory for tpu_custom_call.1']
    #allocation5 [shape = 'u8[8192]{0}', space=vmem, size = 0x2000, scoped, tag = 'input window, operand 2, single buffered']
    #allocation6 [shape = 's32[1]{0}', space=sflag, size = 0x4, scoped, tag = 'scoped memory for tpu_custom_call.1']
    #allocation7 [shape = 'u8[32768]{0}', space=vmem, size = 0x8000, scoped, tag = 'output window, operand 0']
    %10 = vsyncpa [#allocation3], 0
    %s11 = scalar_lea.sflag [#allocation3], 1
    %12 = vsyncpa %s11, 0
    %13 = vsyncpa [#allocation6], 0
    %14 = vsyncpa [#allocation4], 0
    %s15 = scalar_lea.sflag [#allocation4], 1
    %16 = vsyncpa %s15, 0
    loop: start=0, step=1, limit=4
    $region2: #{tpu_custom_call.1} parent=1 // loop_pre_header
      _
    $region3: #{tpu_custom_call.1} parent=1 // loop_header
      %s18 = sphi 0, %s22
      %p19 = scmp.ge.s32.totalorder %s18, 4
      %s28 = sphi 0, %s30
      %s31 = sphi 0, %s28
      %s32 = sphi 0, %s31
      %s48 = sphi 0, %s32
      %s52 = sphi 0, %s52
      %s54 = sphi 0, %s52
      %s55 = sphi 0, %s54
      %s69 = sphi 0, %s55
      %s73 = sphi 0, %s73
      %s75 = sphi 0, %s73
      %s76 = sphi 0, %s75
      %s90 = sphi 0, %s76
      %s94 = sphi 0, %s94
      %s96 = sphi 0, %s94
      %s97 = sphi 0, %s96
      %s111 = sphi 0, %s97
      %s115 = sphi 0, %s115
      %s117 = sphi 0, %s115
      %s118 = sphi 0, %s117
      %s132 = sphi 0, %s118
      %s138 = sphi 0, %s140
      %s141 = sphi 0, %s138
      %s142 = sphi 0, %s141
      %s158 = sphi 0, %s142
    $region4: #{tpu_custom_call.1} parent=1 // loop_header_branch
      %21 = sbr.rel (%p19) target = $region8
    $region5: #{tpu_custom_call.1} parent=1 // loop_body
      %s23 = ssub.s32 %s18, 1
      %s24 = ssub.s32 %s18, 2
      %s25 = sadd.s32 %s18, 1
      %s26 = ssub.s32 %s18, %s25
      %p27 = scmp.eq.s32.totalorder %s26, 0
      %s29 = sadd.s32 %s28, 1
      %s30 = scalar_select %p27, %s28, %s29
      %p33 = pneg %p27
      %p34 = scmp.eq.s32.totalorder %s18, 1
      %p35 = por %p33, %p34
      %p36 = scmp.ne.s32.totalorder %s28, %s31
      %p37 = scmp.eq.s32.totalorder %s18, 0
      %p38 = por %p36, %p37
      %p39 = scmp.ne.s32.totalorder %s28, %s31
      %p40 = scmp.eq.s32.totalorder %s23, 1
      %p41 = por %p39, %p40
      %p42 = scmp.ne.s32.totalorder %s31, %s32
      %p43 = scmp.eq.s32.totalorder %s23, 0
      %p44 = por %p42, %p43
      %p45 = scmp.ne.s32.totalorder %s31, %s32
      %p46 = scmp.eq.s32.totalorder %s24, 1
      %p47 = por %p45, %p46
      %p49 = scmp.ne.s32.totalorder %s32, %s48
      %p50 = scmp.eq.s32.totalorder %s24, 0
      %p51 = por %p49, %p50
      %s53 = sadd.s32 %s52, 1
      %p56 = scmp.eq.s32.totalorder %s18, 1
      %p57 = scmp.ne.s32.totalorder %s52, %s54
      %p58 = scmp.eq.s32.totalorder %s18, 0
      %p59 = por %p57, %p58
      %p60 = scmp.ne.s32.totalorder %s52, %s54
      %p61 = scmp.eq.s32.totalorder %s23, 1
      %p62 = por %p60, %p61
      %p63 = scmp.ne.s32.totalorder %s54, %s55
      %p64 = scmp.eq.s32.totalorder %s23, 0
      %p65 = por %p63, %p64
      %p66 = scmp.ne.s32.totalorder %s54, %s55
      %p67 = scmp.eq.s32.totalorder %s24, 1
      %p68 = por %p66, %p67
      %p70 = scmp.ne.s32.totalorder %s55, %s69
      %p71 = scmp.eq.s32.totalorder %s24, 0
      %p72 = por %p70, %p71
      %s74 = sadd.s32 %s73, 1
      %p77 = scmp.eq.s32.totalorder %s18, 1
      %p78 = scmp.ne.s32.totalorder %s73, %s75
      %p79 = scmp.eq.s32.totalorder %s18, 0
      %p80 = por %p78, %p79
      %p81 = scmp.ne.s32.totalorder %s73, %s75
      %p82 = scmp.eq.s32.totalorder %s23, 1
      %p83 = por %p81, %p82
      %p84 = scmp.ne.s32.totalorder %s75, %s76
      %p85 = scmp.eq.s32.totalorder %s23, 0
      %p86 = por %p84, %p85
      %p87 = scmp.ne.s32.totalorder %s75, %s76
      %p88 = scmp.eq.s32.totalorder %s24, 1
      %p89 = por %p87, %p88
      %p91 = scmp.ne.s32.totalorder %s76, %s90
      %p92 = scmp.eq.s32.totalorder %s24, 0
      %p93 = por %p91, %p92
      %s95 = sadd.s32 %s94, 1
      %p98 = scmp.eq.s32.totalorder %s18, 1
      %p99 = scmp.ne.s32.totalorder %s94, %s96
      %p100 = scmp.eq.s32.totalorder %s18, 0
      %p101 = por %p99, %p100
      %p102 = scmp.ne.s32.totalorder %s94, %s96
      %p103 = scmp.eq.s32.totalorder %s23, 1
      %p104 = por %p102, %p103
      %p105 = scmp.ne.s32.totalorder %s96, %s97
      %p106 = scmp.eq.s32.totalorder %s23, 0
      %p107 = por %p105, %p106
      %p108 = scmp.ne.s32.totalorder %s96, %s97
      %p109 = scmp.eq.s32.totalorder %s24, 1
      %p110 = por %p108, %p109
      %p112 = scmp.ne.s32.totalorder %s97, %s111
      %p113 = scmp.eq.s32.totalorder %s24, 0
      %p114 = por %p112, %p113
      %s116 = sadd.s32 %s115, 1
      %p119 = scmp.eq.s32.totalorder %s18, 1
      %p120 = scmp.ne.s32.totalorder %s115, %s117
      %p121 = scmp.eq.s32.totalorder %s18, 0
      %p122 = por %p120, %p121
      %p123 = scmp.ne.s32.totalorder %s115, %s117
      %p124 = scmp.eq.s32.totalorder %s23, 1
      %p125 = por %p123, %p124
      %p126 = scmp.ne.s32.totalorder %s117, %s118
      %p127 = scmp.eq.s32.totalorder %s23, 0
      %p128 = por %p126, %p127
      %p129 = scmp.ne.s32.totalorder %s117, %s118
      %p130 = scmp.eq.s32.totalorder %s24, 1
      %p131 = por %p129, %p130
      %p133 = scmp.ne.s32.totalorder %s118, %s132
      %p134 = scmp.eq.s32.totalorder %s24, 0
      %p135 = por %p133, %p134
      %s136 = ssub.s32 %s18, %s25
      %p137 = scmp.eq.s32.totalorder %s136, 0
      %s139 = sadd.s32 %s138, 1
      %s140 = scalar_select %p137, %s138, %s139
      %p143 = pneg %p137
      %p144 = scmp.eq.s32.totalorder %s18, 1
      %p145 = por %p143, %p144
      %p146 = scmp.ne.s32.totalorder %s138, %s141
      %p147 = scmp.eq.s32.totalorder %s18, 0
      %p148 = por %p146, %p147
      %p149 = scmp.ne.s32.totalorder %s138, %s141
      %p150 = scmp.eq.s32.totalorder %s23, 1
      %p151 = por %p149, %p150
      %p152 = scmp.ne.s32.totalorder %s141, %s142
      %p153 = scmp.eq.s32.totalorder %s23, 0
      %p154 = por %p152, %p153
      %p155 = scmp.ne.s32.totalorder %s141, %s142
      %p156 = scmp.eq.s32.totalorder %s24, 1
      %p157 = por %p155, %p156
      %p159 = scmp.ne.s32.totalorder %s142, %s158
      %p160 = scmp.eq.s32.totalorder %s24, 0
      %p161 = por %p159, %p160
      %p162 = scmp.le.s32.totalorder 1, %s18
      %p163 = scmp.lt.s32.totalorder %s18, 3
      %p164 = pnand %p162, %p163
      %p165 = pneg %p164
      // Predicated region
      $region9: #{tpu_custom_call.1} parent=5 // pred_check
        _
      $region10: #{tpu_custom_call.1} parent=5 // pred_check_branch
        %167 = sbr.rel (%p164) target = $region12
      $region11: #{tpu_custom_call.1} parent=5 // pred_region
        %s168 = ssub.s32 %s18, 1
        // Predicated region
        $region13: #{tpu_custom_call.1} parent=11 // pred_check
          %p169 = pneg %p65
        $region14: #{tpu_custom_call.1} parent=11 // pred_check_branch
          %171 = sbr.rel (%p169) target = $region16
        $region15: #{tpu_custom_call.1} parent=11 // pred_region
          _
        $region16: #{tpu_custom_call.1} parent=11 // pred_fallthru
          _
        // Predicated region
        $region17: #{tpu_custom_call.1} parent=11 // pred_check
          %p172 = pneg %p86
        $region18: #{tpu_custom_call.1} parent=11 // pred_check_branch
          %174 = sbr.rel (%p172) target = $region20
        $region19: #{tpu_custom_call.1} parent=11 // pred_region
          %176 = vsyncadd [#allocation6], 0
          %s177 = sshll.u32 %s2, 4
          %s178 = int_to_ptr.hbm [resolvable:$true] %s177
          %s179 = sshll.u32 [#allocation5], 4
          %s180 = int_to_ptr.vmem [resolvable:$true] %s179
          %185 = dma.hbm_to_vmem [thread:$0]  %s178, 256, %s180, [#allocation6], 128, 128, 8
        $region20: #{tpu_custom_call.1} parent=11 // pred_fallthru
          _
        // Predicated region
        $region21: #{tpu_custom_call.1} parent=11 // pred_check
          %p186 = pneg %p107
        $region22: #{tpu_custom_call.1} parent=11 // pred_check_branch
          %188 = sbr.rel (%p186) target = $region24
        $region23: #{tpu_custom_call.1} parent=11 // pred_region
          _
        $region24: #{tpu_custom_call.1} parent=11 // pred_fallthru
          _
        // Predicated region
        $region25: #{tpu_custom_call.1} parent=11 // pred_check
          %p189 = pneg %p128
        $region26: #{tpu_custom_call.1} parent=11 // pred_check_branch
          %191 = sbr.rel (%p189) target = $region28
        $region27: #{tpu_custom_call.1} parent=11 // pred_region
          _
        $region28: #{tpu_custom_call.1} parent=11 // pred_fallthru
          _
      $region12: #{tpu_custom_call.1} parent=5 // pred_fallthru
        _
      %p192 = scmp.lt.s32.totalorder %s18, 2
      // Predicated region
      $region29: #{tpu_custom_call.1} parent=5 // pred_check
        %p193 = pneg %p192
      $region30: #{tpu_custom_call.1} parent=5 // pred_check_branch
        %195 = sbr.rel (%p193) target = $region32
      $region31: #{tpu_custom_call.1} parent=5 // pred_region
        // Predicated region
        $region33: #{tpu_custom_call.1} parent=31 // pred_check
          %p196 = pneg %p38
        $region34: #{tpu_custom_call.1} parent=31 // pred_check_branch
          %198 = sbr.rel (%p196) target = $region36
        $region35: #{tpu_custom_call.1} parent=31 // pred_region
          %s199 = sand.u32 %s28, 1
          %s200 = scalar_lea.sflag [#allocation3], %s199
          %s201 = sand.u32 %s28, 1
          %s202 = smul.addr %s201, 32
          %s203 = scalar_lea.vmem [#allocation2], %s202
          %205 = vsyncadd %s200, 0
          %s206 = smul.addr %s18, 4
          %s207 = smul.addr %s206, 8
          %s208 = scalar_lea.hbm %s0, %s207
          %s209 = sshll.u32 %s208, 4
          %s210 = int_to_ptr.hbm [resolvable:$true] %s209
          %s211 = sshll.u32 %s203, 4
          %s212 = int_to_ptr.vmem [resolvable:$true] %s211
          %217 = dma.hbm_to_vmem [thread:$0]  %s210, 512, %s212, %s200, 256, 256, 16
        $region36: #{tpu_custom_call.1} parent=31 // pred_fallthru
          _
      $region32: #{tpu_custom_call.1} parent=5 // pred_fallthru
        _
      %p218 = scmp.le.s32.totalorder 1, %s18
      %p219 = scmp.lt.s32.totalorder %s18, 3
      %p220 = pnand %p218, %p219
      %p221 = pneg %p220
      // Predicated region
      $region37: #{tpu_custom_call.1} parent=5 // pred_check
        _
      $region38: #{tpu_custom_call.1} parent=5 // pred_check_branch
        %223 = sbr.rel (%p220) target = $region40
      $region39: #{tpu_custom_call.1} parent=5 // pred_region
        %s224 = ssub.s32 %s18, 1
        %s225 = sand.u32 %s31, 1
        %s226 = scalar_lea.sflag [#allocation3], %s225
        %s227 = sand.u32 %s31, 1
        %s228 = smul.addr %s227, 32
        %s229 = scalar_lea.vmem [#allocation2], %s228
        // Predicated region
        $region41: #{tpu_custom_call.1} parent=39 // pred_check
          %p230 = pneg %p44
        $region42: #{tpu_custom_call.1} parent=39 // pred_check_branch
          %232 = sbr.rel (%p230) target = $region44
        $region43: #{tpu_custom_call.1} parent=39 // pred_region
          %234 = dma.done %s226, 512
        $region44: #{tpu_custom_call.1} parent=39 // pred_fallthru
          _
        // Predicated region
        $region45: #{tpu_custom_call.1} parent=39 // pred_check
          %p235 = pneg %p86
        $region46: #{tpu_custom_call.1} parent=39 // pred_check_branch
          %237 = sbr.rel (%p235) target = $region48
        $region47: #{tpu_custom_call.1} parent=39 // pred_region
          %239 = dma.done [#allocation6], 256
        $region48: #{tpu_custom_call.1} parent=39 // pred_fallthru
          _
        %s240 = sand.u32 %s31, 1
        %s241 = scalar_lea.sflag [#allocation3], %s240
        %s242 = sand.u32 %s31, 1
        %s243 = smul.addr %s242, 32
        %s244 = scalar_lea.vmem [#allocation2], %s243
        %p245 = pneg %p44
        %p246 = pneg %p41
        %p247 = pneg %p65
        %p248 = pneg %p62
        %p249 = pneg %p86
        %p250 = pneg %p83
        %p251 = pneg %p107
        %p252 = pneg %p104
        %p253 = pneg %p128
        %p254 = pneg %p125
        %p255 = pneg %p154
        %p256 = pneg %p151
        %s257 = sand.u32 %s141, 1
        %s258 = scalar_lea.sflag [#allocation4], %s257
        %s259 = sand.u32 %s141, 1
        %s260 = smul.addr %s259, 32
        %s261 = scalar_lea.vmem [#allocation7], %s260
        %v265 = vlaneseq
        %v266 = vand.u32 %v265, 127
        %v267 = vadd.s32 %v266, 128
        %vm268 = vcmp.lt.s32.totalorder %v266, 0
        %v269 = vsub.s32 0, %v266
        %v270 = vsel %vm268, %v269, %v266
        %v271 = vshrl.u32 %v270, 4
        %v272 = vand.u32 %v270, 15
        %v273 = vsub.s32 0, %v272
        %v274 = vsel %vm268, %v273, %v272
        %vm275 = vcmp.lt.s32.totalorder %v267, 0
        %v276 = vsub.s32 0, %v267
        %v277 = vsel %vm275, %v276, %v267
        %v278 = vshrl.u32 %v277, 4
        %v279 = vand.u32 %v277, 15
        %v280 = vsub.s32 0, %v279
        %v281 = vsel %vm275, %v280, %v279
        %vm282 = vcmp.ne.s32.totalorder %v274, 0
        %vm283 = vcmp.ne.s32.totalorder %v281, 0
        %vm284 = vcmp.lt.s32.totalorder %v274, 0
        %vm285 = vcmp.lt.s32.totalorder %v281, 0
        %vm286 = vmand %vm284, %vm282
        %vm287 = vmand %vm285, %vm283
        %v288 = vadd.s32 %v274, 16
        %v289 = vadd.s32 %v281, 16
        %v290 = vsel %vm286, %v288, %v274
        %v291 = vsel %vm287, %v289, %v281
        %vm292 = vcmp.ge.s32.totalorder %v290, 1
        %vm293 = vcmp.ge.s32.totalorder %v291, 1
        %vm294 = vcmp.lt.s32.totalorder %v290, 15
        %vm295 = vcmp.lt.s32.totalorder %v291, 15
        %v296 = vld [vmem:[%s1] sm:$0xff]
        %v297 = vld [vmem:[%s1 + $0x8] sm:$0xff]
        %v298 = vld [vmem:[#allocation5] sm:$0xff]
        %v299 = vld [vmem:[#allocation5 + $0x8] sm:$0xff]
        %v300 = vld [vmem:[%s3] sm:$0xf]
        %v301 = vld [vmem:[%s4] sm:$0xff]
        %v302 = vld [vmem:[%s4 + $0x8] sm:$0xff]
        %v303 = vld [vmem:[%s229] sm:$0xff]
        %v304 = vld [vmem:[%s229 + $0x8] sm:$0xff]
        %v305 = vld [vmem:[%s229 + $0x10] sm:$0xff]
        %v306 = vld [vmem:[%s229 + $0x18] sm:$0xff]
        %v307 = vpack.c.bf16 %v304, %v303
        %v308 = vpack.c.bf16 %v306, %v305
        %v311 = vunpack.c.l.b16 %v307
        %v312 = vunpack.c.h.b16 %v307
        %v313 = vunpack.c.l.b16 %v308
        %v314 = vunpack.c.h.b16 %v308
        %v315 = vpack.c.b16 %v313, %v311
        %v316 = vpack.c.b16 %v314, %v312
        %317 = vrot.lane.b32.xlu0 %v315, 17
        %v318 = vpop.permute.xlu0 %317
        %319 = vrot.lane.b32.xlu0 %v316, 17
        %v320 = vpop.permute.xlu0 %319
        %vm321 = vcmask 138240
        %v322 = vsel %vm321, %v318, %v320
        %vm324 = vcmask 138240
        %v327 = vsel %vm324, 0, %v318
        %vm329 = vmpackc.low %vm293, %vm292
        %v330 = vsel %vm329, 65537, 0
        %v331 = vperm.slane %v330, 0
        %v332 = vperm.slane %v330, 4
        %v333 = vunpack.c.l.b16 %v331
        %v334 = vunpack.c.h.b16 %v331
        %v335 = vunpack.c.l.b16 0
        %v336 = vunpack.c.h.b16 0
        %vm337 = vcmp.ne.s32.totalorder %v333, %v335
        %vm338 = vcmp.ne.s32.totalorder %v334, %v336
        %vm339 = vmpackc.low %vm338, %vm337
        %v340 = vunpack.c.l.b16 %v332
        %v341 = vunpack.c.h.b16 %v332
        %v342 = vunpack.c.l.b16 0
        %v343 = vunpack.c.h.b16 0
        %vm344 = vcmp.ne.s32.totalorder %v340, %v342
        %vm345 = vcmp.ne.s32.totalorder %v341, %v343
        %vm346 = vmpackc.low %vm345, %vm344
        %v347 = vsel %vm339, %v327, 0
        %v348 = vsel %vm346, %v322, 0
        %349 = vrot.lane.b32.xlu0 %v315, 16
        %v350 = vpop.permute.xlu0 %349
        %351 = vrot.lane.b32.xlu0 %v316, 16
        %v352 = vpop.permute.xlu0 %351
        %vm353 = vcmask 130048
        %v354 = vsel %vm353, %v350, %v352
        %vm356 = vcmask 130048
        %v358 = vsel %vm356, 0, %v350
        %360 = vrot.lane.b32.xlu0 %v315, 15
        %v361 = vpop.permute.xlu0 %360
        %362 = vrot.lane.b32.xlu0 %v316, 15
        %v363 = vpop.permute.xlu0 %362
        %vm364 = vcmask 121856
        %v365 = vsel %vm364, %v361, %v363
        %vm367 = vcmask 121856
        %v369 = vsel %vm367, 0, %v361
        %vm371 = vmpackc.low %vm295, %vm294
        %v372 = vsel %vm371, 65537, 0
        %v373 = vperm.slane %v372, 0
        %v374 = vperm.slane %v372, 4
        %v375 = vunpack.c.l.b16 %v373
        %v376 = vunpack.c.h.b16 %v373
        %v377 = vunpack.c.l.b16 0
        %v378 = vunpack.c.h.b16 0
        %vm379 = vcmp.ne.s32.totalorder %v375, %v377
        %vm380 = vcmp.ne.s32.totalorder %v376, %v378
        %vm381 = vmpackc.low %vm380, %vm379
        %v382 = vunpack.c.l.b16 %v374
        %v383 = vunpack.c.h.b16 %v374
        %v384 = vunpack.c.l.b16 0
        %v385 = vunpack.c.h.b16 0
        %vm386 = vcmp.ne.s32.totalorder %v382, %v384
        %vm387 = vcmp.ne.s32.totalorder %v383, %v385
        %vm388 = vmpackc.low %vm387, %vm386
        %v389 = vsel %vm381, %v369, 0
        %v390 = vsel %vm388, %v365, 0
        %391 = vrot.lane.b32.xlu0 %v315, 1
        %v392 = vpop.permute.xlu0 %391
        %393 = vrot.lane.b32.xlu0 %v316, 1
        %v394 = vpop.permute.xlu0 %393
        %vm395 = vcmask 7168
        %v396 = vsel %vm395, %v392, %v394
        %vm398 = vcmask 7168
        %v400 = vsel %vm398, 0, %v392
        %v402 = vsel %vm339, %v400, 0
        %v403 = vsel %vm346, %v396, 0
        %404 = vrot.lane.b32.xlu0 %v315, 127
        %v405 = vpop.permute.xlu0 %404
        %406 = vrot.lane.b32.xlu0 %v316, 127
        %v407 = vpop.permute.xlu0 %406
        %vm408 = vcmask 1039360
        %v409 = vsel %vm408, %v405, %v407
        %vm411 = vcmask 1039360
        %v413 = vsel %vm411, %v407, 0
        %v415 = vsel %vm381, %v409, 0
        %v416 = vsel %vm388, %v413, 0
        %417 = vrot.lane.b32.xlu0 %v315, 113
        %v418 = vpop.permute.xlu0 %417
        %419 = vrot.lane.b32.xlu0 %v316, 113
        %v420 = vpop.permute.xlu0 %419
        %vm421 = vcmask 924672
        %v422 = vsel %vm421, %v418, %v420
        %vm424 = vcmask 924672
        %v426 = vsel %vm424, %v420, 0
        %v428 = vsel %vm339, %v422, 0
        %v429 = vsel %vm346, %v426, 0
        %430 = vrot.lane.b32.xlu0 %v315, 112
        %v431 = vpop.permute.xlu0 %430
        %432 = vrot.lane.b32.xlu0 %v316, 112
        %v433 = vpop.permute.xlu0 %432
        %vm434 = vcmask 916480
        %v435 = vsel %vm434, %v431, %v433
        %vm437 = vcmask 916480
        %v439 = vsel %vm437, %v433, 0
        %441 = vrot.lane.b32.xlu0 %v315, 111
        %v442 = vpop.permute.xlu0 %441
        %443 = vrot.lane.b32.xlu0 %v316, 111
        %v444 = vpop.permute.xlu0 %443
        %vm445 = vcmask 908288
        %v446 = vsel %vm445, %v442, %v444
        %vm448 = vcmask 908288
        %v450 = vsel %vm448, %v444, 0
        %v452 = vsel %vm381, %v446, 0
        %v453 = vsel %vm388, %v450, 0
        %v458 = vunpack.c.l.b16 %v296
        %v459 = vunpack.c.h.b16 %v296
        %v460 = vunpack.c.l.b16 %v297
        %v461 = vunpack.c.h.b16 %v297
        %v462 = vpack.c.b16 %v460, %v458
        %v463 = vpack.c.b16 %v461, %v459
        %v466 = vsel %vm356, %v463, 0
        %468 = vmatpush.bf16.msra.mxu0 %v435
        %469 = vmatpush.bf16.msra.mxu0 %v428
        %470 = vmatpush.bf16.msra.mxu0 %v415
        %471 = vmatpush.bf16.msra.mxu0 %v315
        %472 = vmatpush.bf16.msra.mxu0 %v402
        %473 = vmatpush.bf16.msra.mxu0 %v389
        %474 = vmatpush.bf16.msra.mxu0 %v358
        %475 = vmatpush.bf16.msra.mxu0 %v347
        %476 = vmatmul.bf16.gmra.mxu0 %v462
        %v477 = vpop.f32.mrf.mxu0
        %v478 = vadd.f32 0.0, %v477
        %v479 = vpop.f32.mrf.mxu0
        %v480 = vadd.f32 0.0, %v479
        %481 = vdwg.mxu0
        %482 = vmatpush.bf16.msra.mxu0 0
        %483 = vmatpush.bf16.msra.mxu0 0
        %484 = vmatpush.bf16.msra.mxu0 0
        %485 = vmatpush.bf16.msra.mxu0 0
        %486 = vmatpush.bf16.msra.mxu0 0
        %487 = vmatpush.bf16.msra.mxu0 0
        %488 = vmatpush.bf16.msra.mxu0 0
        %489 = vmatpush.bf16.msra.mxu0 %v452
        %490 = vmatmul.bf16.gmra.mxu0 %v466
        %v491 = vpop.f32.mrf.mxu0
        %v492 = vadd.f32 %v478, %v491
        %v493 = vpop.f32.mrf.mxu0
        %v494 = vadd.f32 %v480, %v493
        %495 = vdwg.mxu0
        %496 = vmatpush.bf16.msra.mxu0 %v439
        %497 = vmatpush.bf16.msra.mxu0 %v429
        %498 = vmatpush.bf16.msra.mxu0 %v416
        %499 = vmatpush.bf16.msra.mxu0 %v316
        %500 = vmatpush.bf16.msra.mxu0 %v403
        %501 = vmatpush.bf16.msra.mxu0 %v390
        %502 = vmatpush.bf16.msra.mxu0 %v354
        %503 = vmatpush.bf16.msra.mxu0 %v348
        %504 = vmatmul.bf16.gmra.mxu0 %v462
        %v505 = vpop.f32.mrf.mxu0
        %v506 = vadd.f32 0.0, %v505
        %v507 = vpop.f32.mrf.mxu0
        %v508 = vadd.f32 0.0, %v507
        %509 = vdwg.mxu0
        %510 = vmatpush.bf16.msra.mxu0 0
        %511 = vmatpush.bf16.msra.mxu0 0
        %512 = vmatpush.bf16.msra.mxu0 0
        %513 = vmatpush.bf16.msra.mxu0 0
        %514 = vmatpush.bf16.msra.mxu0 0
        %515 = vmatpush.bf16.msra.mxu0 0
        %516 = vmatpush.bf16.msra.mxu0 0
        %517 = vmatpush.bf16.msra.mxu0 %v453
        %518 = vmatmul.bf16.gmra.mxu0 %v466
        %v519 = vpop.f32.mrf.mxu0
        %v520 = vadd.f32 %v506, %v519
        %v521 = vpop.f32.mrf.mxu0
        %v522 = vadd.f32 %v508, %v521
        %523 = vdwg.mxu0
        %v524 = vmax.f32 %v492, 0.0
        %v525 = vmax.f32 %v520, 0.0
        %v526 = vmax.f32 %v494, 0.0
        %v527 = vmax.f32 %v522, 0.0
        %v528 = vpack.c.bf16 %v525, %v524
        %v529 = vpack.c.bf16 %v527, %v526
        %v532 = vunpack.c.l.b16 %v528
        %v533 = vunpack.c.h.b16 %v528
        %v534 = vunpack.c.l.b16 %v529
        %v535 = vunpack.c.h.b16 %v529
        %v536 = vpack.c.b16 %v534, %v532
        %v537 = vpack.c.b16 %v535, %v533
        %538 = vrot.lane.b32.xlu0 %v536, 17
        %v539 = vpop.permute.xlu0 %538
        %540 = vrot.lane.b32.xlu0 %v537, 17
        %v541 = vpop.permute.xlu0 %540
        %v542 = vsel %vm321, %v539, %v541
        %v545 = vsel %vm324, 0, %v539
        %v547 = vsel %vm339, %v545, 0
        %v548 = vsel %vm346, %v542, 0
        %549 = vrot.lane.b32.xlu0 %v536, 16
        %v550 = vpop.permute.xlu0 %549
        %551 = vrot.lane.b32.xlu0 %v537, 16
        %v552 = vpop.permute.xlu0 %551
        %v553 = vsel %vm353, %v550, %v552
        %v556 = vsel %vm356, 0, %v550
        %558 = vrot.lane.b32.xlu0 %v536, 15
        %v559 = vpop.permute.xlu0 %558
        %560 = vrot.lane.b32.xlu0 %v537, 15
        %v561 = vpop.permute.xlu0 %560
        %v562 = vsel %vm364, %v559, %v561
        %v565 = vsel %vm367, 0, %v559
        %v567 = vsel %vm381, %v565, 0
        %v568 = vsel %vm388, %v562, 0
        %569 = vrot.lane.b32.xlu0 %v536, 1
        %v570 = vpop.permute.xlu0 %569
        %571 = vrot.lane.b32.xlu0 %v537, 1
        %v572 = vpop.permute.xlu0 %571
        %v573 = vsel %vm395, %v570, %v572
        %v576 = vsel %vm398, 0, %v570
        %v578 = vsel %vm339, %v576, 0
        %v579 = vsel %vm346, %v573, 0
        %580 = vrot.lane.b32.xlu0 %v536, 127
        %v581 = vpop.permute.xlu0 %580
        %582 = vrot.lane.b32.xlu0 %v537, 127
        %v583 = vpop.permute.xlu0 %582
        %v584 = vsel %vm408, %v581, %v583
        %v587 = vsel %vm411, %v583, 0
        %v589 = vsel %vm381, %v584, 0
        %v590 = vsel %vm388, %v587, 0
        %591 = vrot.lane.b32.xlu0 %v536, 113
        %v592 = vpop.permute.xlu0 %591
        %593 = vrot.lane.b32.xlu0 %v537, 113
        %v594 = vpop.permute.xlu0 %593
        %v595 = vsel %vm421, %v592, %v594
        %v598 = vsel %vm424, %v594, 0
        %v600 = vsel %vm339, %v595, 0
        %v601 = vsel %vm346, %v598, 0
        %602 = vrot.lane.b32.xlu0 %v536, 112
        %v603 = vpop.permute.xlu0 %602
        %604 = vrot.lane.b32.xlu0 %v537, 112
        %v605 = vpop.permute.xlu0 %604
        %v606 = vsel %vm434, %v603, %v605
        %v609 = vsel %vm437, %v605, 0
        %611 = vrot.lane.b32.xlu0 %v536, 111
        %v612 = vpop.permute.xlu0 %611
        %613 = vrot.lane.b32.xlu0 %v537, 111
        %v614 = vpop.permute.xlu0 %613
        %v615 = vsel %vm445, %v612, %v614
        %v618 = vsel %vm448, %v614, 0
        %v620 = vsel %vm381, %v615, 0
        %v621 = vsel %vm388, %v618, 0
        %v626 = vunpack.c.l.b16 %v298
        %v627 = vunpack.c.h.b16 %v298
        %v628 = vunpack.c.l.b16 %v299
        %v629 = vunpack.c.h.b16 %v299
        %v630 = vpack.c.b16 %v628, %v626
        %v631 = vpack.c.b16 %v629, %v627
        %v634 = vsel %vm356, %v631, 0
        %636 = vmatpush.bf16.msra.mxu0 %v606
        %637 = vmatpush.bf16.msra.mxu0 %v600
        %638 = vmatpush.bf16.msra.mxu0 %v589
        %639 = vmatpush.bf16.msra.mxu0 %v536
        %640 = vmatpush.bf16.msra.mxu0 %v578
        %641 = vmatpush.bf16.msra.mxu0 %v567
        %642 = vmatpush.bf16.msra.mxu0 %v556
        %643 = vmatpush.bf16.msra.mxu0 %v547
        %644 = vmatmul.bf16.gmra.mxu0 %v630
        %v645 = vpop.f32.mrf.mxu0
        %v646 = vadd.f32 0.0, %v645
        %v647 = vpop.f32.mrf.mxu0
        %v648 = vadd.f32 0.0, %v647
        %649 = vdwg.mxu0
        %650 = vmatpush.bf16.msra.mxu0 0
        %651 = vmatpush.bf16.msra.mxu0 0
        %652 = vmatpush.bf16.msra.mxu0 0
        %653 = vmatpush.bf16.msra.mxu0 0
        %654 = vmatpush.bf16.msra.mxu0 0
        %655 = vmatpush.bf16.msra.mxu0 0
        %656 = vmatpush.bf16.msra.mxu0 0
        %657 = vmatpush.bf16.msra.mxu0 %v620
        %658 = vmatmul.bf16.gmra.mxu0 %v634
        %v659 = vpop.f32.mrf.mxu0
        %v660 = vadd.f32 %v646, %v659
        %v661 = vpop.f32.mrf.mxu0
        %v662 = vadd.f32 %v648, %v661
        %663 = vdwg.mxu0
        %664 = vmatpush.bf16.msra.mxu0 %v609
        %665 = vmatpush.bf16.msra.mxu0 %v601
        %666 = vmatpush.bf16.msra.mxu0 %v590
        %667 = vmatpush.bf16.msra.mxu0 %v537
        %668 = vmatpush.bf16.msra.mxu0 %v579
        %669 = vmatpush.bf16.msra.mxu0 %v568
        %670 = vmatpush.bf16.msra.mxu0 %v553
        %671 = vmatpush.bf16.msra.mxu0 %v548
        %672 = vmatmul.bf16.gmra.mxu0 %v630
        %v673 = vpop.f32.mrf.mxu0
        %v674 = vadd.f32 0.0, %v673
        %v675 = vpop.f32.mrf.mxu0
        %v676 = vadd.f32 0.0, %v675
        %677 = vdwg.mxu0
        %678 = vmatpush.bf16.msra.mxu0 0
        %679 = vmatpush.bf16.msra.mxu0 0
        %680 = vmatpush.bf16.msra.mxu0 0
        %681 = vmatpush.bf16.msra.mxu0 0
        %682 = vmatpush.bf16.msra.mxu0 0
        %683 = vmatpush.bf16.msra.mxu0 0
        %684 = vmatpush.bf16.msra.mxu0 0
        %685 = vmatpush.bf16.msra.mxu0 %v621
        %686 = vmatmul.bf16.gmra.mxu0 %v634
        %v687 = vpop.f32.mrf.mxu0
        %v688 = vadd.f32 %v674, %v687
        %v689 = vpop.f32.mrf.mxu0
        %v690 = vadd.f32 %v676, %v689
        %691 = vdwg.mxu0
        %v692 = vadd.f32 %v660, %v688
        %693 = vadd.xlane.f32.xlu0 %v692
        %v694 = vpop.xlane.xlu0 %693
        %v695 = vadd.f32 %v662, %v690
        %696 = vadd.xlane.f32.xlu0 %v695
        %v697 = vpop.xlane.xlu0 %696
        %v698 = vrcp.pop 256.0
        %v699 = vmul.f32 256.0, %v698
        %v700 = vsub.f32 1.0, %v699
        %v701 = vmul.f32 %v698, %v700
        %v702 = vadd.f32 %v698, %v701
        %vm703 = vweird.f32 %v698
        %v704 = vsel %vm703, %v698, %v702
        %v705 = vmul.f32 %v694, %v704
        %v706 = vmul.f32 %v697, %v704
        %v708 = vsel %vm356, %v300, 0
        %710 = vmatpush.msra.mxu0 0.0
        %711 = vmatpush.msra.mxu0 0.0
        %712 = vmatpush.msra.mxu0 0.0
        %713 = vmatpush.msra.mxu0 0.0
        %714 = vmatpush.msra.mxu0 0.0
        %715 = vmatpush.msra.mxu0 0.0
        %716 = vmatpush.msra.mxu0 0.0
        %717 = vmatpush.msra.mxu0 0.0
        %718 = vmatpush.msra.mxu0 0.0
        %719 = vmatpush.msra.mxu0 0.0
        %720 = vmatpush.msra.mxu0 0.0
        %721 = vmatpush.msra.mxu0 0.0
        %722 = vmatpush.msra.mxu0 0.0
        %723 = vmatpush.msra.mxu0 0.0
        %724 = vmatpush.msra.mxu0 %v706
        %725 = vmatpush.msra.mxu0 %v705
        %726 = vmatmul.f32.gmra.mxu0 %v708
        %v727 = vpop.f32.mrf.mxu0
        %v728 = vadd.f32 0.0, %v727
        %729 = vdwg.mxu0
        %v730 = vmax.f32 %v728, 0.0
        %vm731 = vcmask 31744
        %v733 = vsel %vm731, %v301, 0
        %v736 = vsel %vm731, %v302, 0
        %vm738 = vcmask 1043456
        %v740 = vsel %vm738, %v730, 0
        %742 = vmatpush.msra.mxu0 0.0
        %743 = vmatpush.msra.mxu0 0.0
        %744 = vmatpush.msra.mxu0 0.0
        %745 = vmatpush.msra.mxu0 0.0
        %746 = vmatpush.msra.mxu0 0.0
        %747 = vmatpush.msra.mxu0 0.0
        %748 = vmatpush.msra.mxu0 0.0
        %749 = vmatpush.msra.mxu0 0.0
        %750 = vmatpush.msra.mxu0 0.0
        %751 = vmatpush.msra.mxu0 0.0
        %752 = vmatpush.msra.mxu0 0.0
        %753 = vmatpush.msra.mxu0 0.0
        %754 = vmatpush.msra.mxu0 0.0
        %755 = vmatpush.msra.mxu0 0.0
        %756 = vmatpush.msra.mxu0 0.0
        %757 = vmatpush.msra.mxu0 %v740
        %758 = vmatmul.f32.gmra.mxu0 %v733
        %v759 = vpop.f32.mrf.mxu0
        %v760 = vadd.f32 0.0, %v759
        %761 = vmatmul.f32.gmra.mxu0 %v736
        %v762 = vpop.f32.mrf.mxu0
        %v763 = vadd.f32 0.0, %v762
        %764 = vdwg.mxu0
        %v765 = vxor.u32 %v760, 2147483648
        %v766 = vxor.u32 %v763, 2147483648
        %v767 = vmul.f32 %v765, 1.442695
        %v768 = vpow.pop %v767
        %v769 = vmul.f32 %v766, 1.442695
        %v770 = vpow.pop %v769
        %v771 = vadd.f32 %v768, 1.0
        %v772 = vadd.f32 %v770, 1.0
        %v773 = vrcp.pop %v771
        %v774 = vmul.f32 %v771, %v773
        %v775 = vsub.f32 1.0, %v774
        %v776 = vmul.f32 %v773, %v775
        %v777 = vadd.f32 %v773, %v776
        %vm778 = vweird.f32 %v771
        %vm779 = vweird.f32 %v773
        %vm780 = vmor %vm778, %vm779
        %v781 = vsel %vm780, %v773, %v777
        %v782 = vand.u32 2147483647, %v771
        %vm783 = vcmp.eq.f32.partialorder %v782, 8.507059e+37
        %v784 = vand.u32 %v771, 2147483648
        %v785 = vor.u32 1.1754944e-38, %v784
        %v786 = vsel %vm783, %v785, %v781
        %v787 = vmul.f32 1.0, %v786
        %v788 = vrcp.pop %v772
        %v789 = vmul.f32 %v772, %v788
        %v790 = vsub.f32 1.0, %v789
        %v791 = vmul.f32 %v788, %v790
        %v792 = vadd.f32 %v788, %v791
        %vm793 = vweird.f32 %v772
        %vm794 = vweird.f32 %v788
        %vm795 = vmor %vm793, %vm794
        %v796 = vsel %vm795, %v788, %v792
        %v797 = vand.u32 2147483647, %v772
        %vm798 = vcmp.eq.f32.partialorder %v797, 8.507059e+37
        %v799 = vand.u32 %v772, 2147483648
        %v800 = vor.u32 1.1754944e-38, %v799
        %v801 = vsel %vm798, %v800, %v796
        %v802 = vmul.f32 1.0, %v801
        %804 = vset.pattern.permute.xlu0 0
        %805 = vperm.xlu0 %804, %v787
        %v806 = vpop.permute.xlu0 %805
        %809 = vset.pattern.permute.xlu0 0
        %810 = vperm.xlu0 %809, %v802
        %v811 = vpop.permute.xlu0 %810
        %v813 = vmul.f32 %v660, %v806
        %v814 = vmul.f32 %v688, %v806
        %v815 = vmul.f32 %v662, %v811
        %v816 = vmul.f32 %v690, %v811
        %v817 = vadd.f32 %v813, %v303
        %v818 = vadd.f32 %v814, %v304
        %v819 = vadd.f32 %v815, %v305
        %v820 = vadd.f32 %v816, %v306
        %821 = vst [vmem:[%s261] sm:$0xff] %v817
        %822 = vst [vmem:[%s261 + $0x8] sm:$0xff] %v818
        %823 = vst [vmem:[%s261 + $0x10] sm:$0xff] %v819
        %824 = vst [vmem:[%s261 + $0x18] sm:$0xff] %v820
        %s825 = sand.u32 %s141, 1
        %s826 = scalar_lea.sflag [#allocation4], %s825
        %s827 = sand.u32 %s141, 1
        %s828 = smul.addr %s827, 32
        %s829 = scalar_lea.vmem [#allocation7], %s828
        // Predicated region
        $region49: #{tpu_custom_call.1} parent=39 // pred_check
          %p830 = pneg %p151
        $region50: #{tpu_custom_call.1} parent=39 // pred_check_branch
          %832 = sbr.rel (%p830) target = $region52
        $region51: #{tpu_custom_call.1} parent=39 // pred_region
          %834 = vsyncadd %s826, 0
          %s835 = smul.addr %s23, 4
          %s836 = smul.addr %s835, 8
          %s837 = scalar_lea.hbm %s5, %s836
          %s838 = sshll.u32 %s829, 4
          %s839 = int_to_ptr.vmem [resolvable:$true] %s838
          %s840 = sshll.u32 %s837, 4
          %s841 = int_to_ptr.hbm [resolvable:$true] %s840
          %846 = dma.vmem_to_hbm [thread:$0]  %s839, 512, %s841, %s826, 256, 256, 16
        $region52: #{tpu_custom_call.1} parent=39 // pred_fallthru
          _
      $region40: #{tpu_custom_call.1} parent=5 // pred_fallthru
        _
      %p847 = scmp.le.s32.totalorder 2, %s18
      // Predicated region
      $region53: #{tpu_custom_call.1} parent=5 // pred_check
        %p848 = pneg %p847
      $region54: #{tpu_custom_call.1} parent=5 // pred_check_branch
        %850 = sbr.rel (%p848) target = $region56
      $region55: #{tpu_custom_call.1} parent=5 // pred_region
        %s851 = ssub.s32 %s18, 2
        // Predicated region
        $region57: #{tpu_custom_call.1} parent=55 // pred_check
          %p852 = pneg %p157
        $region58: #{tpu_custom_call.1} parent=55 // pred_check_branch
          %854 = sbr.rel (%p852) target = $region60
        $region59: #{tpu_custom_call.1} parent=55 // pred_region
          %s855 = sand.u32 %s142, 1
          %s856 = scalar_lea.sflag [#allocation4], %s855
          %s857 = sand.u32 %s142, 1
          %s858 = smul.addr %s857, 32
          %s859 = scalar_lea.vmem [#allocation7], %s858
          %861 = dma.done %s856, 512
        $region60: #{tpu_custom_call.1} parent=55 // pred_fallthru
          _
      $region56: #{tpu_custom_call.1} parent=5 // pred_fallthru
        _
    $region6: #{tpu_custom_call.1} parent=1 // loop_footer
      %s22 = sadd.s32 1, %s18
    $region7: #{tpu_custom_call.1} parent=1 // loop_footer_branch
      %17 = sbr.rel target = $region3
    $region8: #{tpu_custom_call.1} parent=1 // loop_exit
      _
    %862 = vsyncpa [#allocation3], 1
    %s863 = scalar_lea.sflag [#allocation3], 1
    %864 = vsyncpa %s863, 1
    %865 = vsyncpa [#allocation6], 1
    %866 = vsyncpa [#allocation4], 1
    %s867 = scalar_lea.sflag [#allocation4], 1
    %868 = vsyncpa %s867, 1

</llo_original>
